<compile_context>
chip_gen: v7x
topology: tpu7x:2x2x1
jax: 0.10.0
libtpu: 0.0.40
codegen_flags: <defaults>
</compile_context>

<pallas_src>
import jax
import jax.numpy as jnp
from jax import lax
from jax.experimental import pallas as pl
from jax.experimental.pallas import tpu as pltpu

# ---- small config consistent with the module ----
BATCH = 2
SEQ = 8
VOCAB = 64
NUM_CLASSES = 8
N_TOK = VOCAB + NUM_CLASSES     # rows in both embedding tables
N_EMBD = 32
RANK = 16


def low_rank_embed_kernel(tok_ref, emb_ref, a_ref, b_ref, o_ref):
    """One batch row per grid step; everything VMEM-resident.

    tok_ref : (T, 1) int32   token ids for this batch row
    emb_ref : (V, C) f32     embedding.weight          (zero-init in the module)
    a_ref   : (V, R) f32     low_rank_embedding_A.weight
    b_ref   : (C, R) f32     low_rank_embedding_B.weight (PyTorch (out, in))
    o_ref   : (T, C) f32
    """
    T = tok_ref.shape[0]
    V = emb_ref.shape[0]

    tok = tok_ref[...]                                        # (T, 1) int32
    col = lax.broadcasted_iota(jnp.int32, (T, V), 1)
    onehot = (col == tok).astype(jnp.float32)                 # (T, V)

    # Both table lookups as MXU matmuls against the one-hot selector.
    e = jnp.dot(onehot, emb_ref[...],
                preferred_element_type=jnp.float32)           # (T, C)
    a = jnp.dot(onehot, a_ref[...],
                preferred_element_type=jnp.float32)           # (T, R)

    # low_rank_embedding_B: y = a @ W^T with W stored (C, R) — contract dim 1
    # of both operands so no wrapper-side transpose is ever materialized.
    low = lax.dot_general(
        a, b_ref[...],
        dimension_numbers=(((1,), (1,)), ((), ())),
        preferred_element_type=jnp.float32,
    )                                                         # (T, C)

    o_ref[...] = (e + low).astype(o_ref.dtype)


def low_rank_zero_embedding(tok, emb_w, a_w, b_w):
    """Mirrors LowRankZeroEmbedding.forward(tok).

    tok   : (B, T) int32
    emb_w : (V, C)  embedding.weight
    a_w   : (V, R)  low_rank_embedding_A.weight
    b_w   : (C, R)  low_rank_embedding_B.weight (out_features, in_features)
    returns (B, T, C)
    """
    Bx, Tx = tok.shape
    V, C = emb_w.shape
    R = a_w.shape[1]

    tok_flat = tok.reshape(Bx * Tx, 1).astype(jnp.int32)

    out = pl.pallas_call(
        low_rank_embed_kernel,
        out_shape=jax.ShapeDtypeStruct((Bx * Tx, C), emb_w.dtype),
        grid=(Bx,),
        in_specs=[
            pl.BlockSpec((Tx, 1), lambda b: (b, 0)),   # tok: per-batch slice
            pl.BlockSpec((V, C), lambda b: (0, 0)),    # embedding table (resident)
            pl.BlockSpec((V, R), lambda b: (0, 0)),    # A table (resident)
            pl.BlockSpec((C, R), lambda b: (0, 0)),    # B weight (resident)
        ],
        out_specs=pl.BlockSpec((Tx, C), lambda b: (b, 0)),
        compiler_params=pltpu.CompilerParams(
            dimension_semantics=("parallel",),
        ),
    )(tok_flat, emb_w, a_w, b_w)

    return out.reshape(Bx, Tx, C)


# ----------------------------------------------------------------------------
# Pure-JAX reference (direct transcription of the PyTorch forward)
# ----------------------------------------------------------------------------
def reference(tok, emb_w, a_w, b_w):
    e = emb_w[tok]                                  # embedding(tok)
    a = a_w[tok]                                    # low_rank_embedding_A(tok)
    return e + jnp.einsum("btr,cr->btc", a, b_w)    # + low_rank_embedding_B(...)


if __name__ == "__main__":
    key = jax.random.PRNGKey(0)
    k_tok, k_emb, k_a, k_b = jax.random.split(key, 4)

    tok = jax.random.randint(k_tok, (BATCH, SEQ), 0, N_TOK, dtype=jnp.int32)

    # NOTE: the module zero-inits `embedding.weight`; small random values are
    # used here (as if after training) so the full-rank gather path is actually
    # exercised by the numerical check.  A/B match the module's normal(0, 0.1).
    emb_w = jax.random.normal(k_emb, (N_TOK, N_EMBD), jnp.float32) * 0.02
    a_w = jax.random.normal(k_a, (N_TOK, RANK), jnp.float32) * 0.1
    b_w = jax.random.normal(k_b, (N_EMBD, RANK), jnp.float32) * 0.1

    y = low_rank_zero_embedding(tok, emb_w, a_w, b_w)
    y = jax.block_until_ready(y)

    y_ref = reference(tok, emb_w, a_w, b_w)
    assert y.shape == (BATCH, SEQ, N_EMBD)
    assert jnp.allclose(y, y_ref, atol=1e-5, rtol=1e-5), \
        "LowRankZeroEmbedding output mismatch"

    print("KERNEL_OK")
</pallas_src>

<mosaic_0001>
module attributes {stable_mosaic.version = 11 : i64} {
  func.func @low_rank_embed_kernel(%arg0: i32, %arg1: memref<8x1xi32, #tpu.memory_space<vmem>>, %arg2: memref<72x32xf32, #tpu.memory_space<vmem>>, %arg3: memref<72x16xf32, #tpu.memory_space<vmem>>, %arg4: memref<32x16xf32, #tpu.memory_space<vmem>>, %arg5: memref<8x32xf32, #tpu.memory_space<vmem>>) attributes {dimension_semantics = [#tpu.dimension_semantics<parallel>], iteration_bounds = array<i64: 2>, scalar_prefetch = 0 : i64, scratch_operands = 0 : i64, tpu.core_type = #tpu.core_type<tc>, window_params = [{transform_indices = @transform_0, window_bounds = array<i64: 8, 1>}, {pipeline_mode = #tpu.pipeline_mode<synchronous>, transform_indices = @transform_1, window_bounds = array<i64: 72, 32>}, {pipeline_mode = #tpu.pipeline_mode<synchronous>, transform_indices = @transform_2, window_bounds = array<i64: 72, 16>}, {pipeline_mode = #tpu.pipeline_mode<synchronous>, transform_indices = @transform_3, window_bounds = array<i64: 32, 16>}, {transform_indices = @transform_4, window_bounds = array<i64: 8, 32>}]} {
    %c0 = arith.constant 0 : index
    %c0_0 = arith.constant 0 : index
    %0 = vector.load %arg1[%c0, %c0_0] : memref<8x1xi32, #tpu.memory_space<vmem>>, vector<8x1xi32>
    %1 = tpu.iota {dimensions = array<i32: 1>} : vector<8x72xi32>
    %2 = vector.broadcast %0 : vector<8x1xi32> to vector<8x72xi32>
    %3 = arith.cmpi eq, %1, %2 : vector<8x72xi32>
    %4 = arith.extui %3 : vector<8x72xi1> to vector<8x72xi32>
    %5 = arith.sitofp %4 : vector<8x72xi32> to vector<8x72xf32>
    %c0_1 = arith.constant 0 : index
    %c0_2 = arith.constant 0 : index
    %6 = vector.load %arg2[%c0_1, %c0_2] : memref<72x32xf32, #tpu.memory_space<vmem>>, vector<72x32xf32>
    %cst = arith.constant dense<0.000000e+00> : vector<8x32xf32>
    %7 = tpu.matmul %5, %6, %cst {dimension_numbers = #tpu.dot_dimension_numbers<[1], [0], [0], [1], [0, 0, 1, 1], [], []>} : vector<8x72xf32>, vector<72x32xf32>, vector<8x32xf32> -> vector<8x32xf32>
    %c0_3 = arith.constant 0 : index
    %c0_4 = arith.constant 0 : index
    %8 = vector.load %arg3[%c0_3, %c0_4] : memref<72x16xf32, #tpu.memory_space<vmem>>, vector<72x16xf32>
    %cst_5 = arith.constant dense<0.000000e+00> : vector<8x16xf32>
    %9 = tpu.matmul %5, %8, %cst_5 {dimension_numbers = #tpu.dot_dimension_numbers<[1], [0], [0], [1], [0, 0, 1, 1], [], []>} : vector<8x72xf32>, vector<72x16xf32>, vector<8x16xf32> -> vector<8x16xf32>
    %c0_6 = arith.constant 0 : index
    %c0_7 = arith.constant 0 : index
    %10 = vector.load %arg4[%c0_6, %c0_7] : memref<32x16xf32, #tpu.memory_space<vmem>>, vector<32x16xf32>
    %cst_8 = arith.constant dense<0.000000e+00> : vector<8x32xf32>
    %11 = tpu.matmul %9, %10, %cst_8 {dimension_numbers = #tpu.dot_dimension_numbers<[1], [1], [0], [0], [0, 0, 1, 0], [], []>} : vector<8x16xf32>, vector<32x16xf32>, vector<8x32xf32> -> vector<8x32xf32>
    %12 = arith.addf %7, %11 : vector<8x32xf32>
    %c0_9 = arith.constant 0 : index
    %c0_10 = arith.constant 0 : index
    %13 = vector.load %arg5[%c0_9, %c0_10] : memref<8x32xf32, #tpu.memory_space<vmem>>, vector<8x32xf32>
    tpu.vector_store %arg5[%c0_9, %c0_10], %12 {strides = array<i32>} : memref<8x32xf32, #tpu.memory_space<vmem>>, vector<8x32xf32>,
    return
  }
  func.func @transform_0(%arg0: i32) -> (i32, i32) {
    %c0_i32 = arith.constant 0 : i32
    %c0_i32_0 = arith.constant 0 : i32
    return %arg0, %c0_i32 : i32, i32
  }
  func.func @transform_1(%arg0: i32) -> (i32, i32) {
    %c0_i32 = arith.constant 0 : i32
    %c0_i32_0 = arith.constant 0 : i32
    %c0_i32_1 = arith.constant 0 : i32
    return %c0_i32, %c0_i32_0 : i32, i32
  }
  func.func @transform_2(%arg0: i32) -> (i32, i32) {
    %c0_i32 = arith.constant 0 : i32
    %c0_i32_0 = arith.constant 0 : i32
    %c0_i32_1 = arith.constant 0 : i32
    return %c0_i32, %c0_i32_0 : i32, i32
  }
  func.func @transform_3(%arg0: i32) -> (i32, i32) {
    %c0_i32 = arith.constant 0 : i32
    %c0_i32_0 = arith.constant 0 : i32
    %c0_i32_1 = arith.constant 0 : i32
    return %c0_i32, %c0_i32_0 : i32, i32
  }
  func.func @transform_4(%arg0: i32) -> (i32, i32) {
    %c0_i32 = arith.constant 0 : i32
    %c0_i32_0 = arith.constant 0 : i32
    return %arg0, %c0_i32 : i32, i32
  }
}

</mosaic_0001>

<llo_original>
// kernel: tpu_custom_call.1
$region0: #{tpu_custom_call.1}
  #allocation0 [shape = 'u32[]', space=smem, size = 0x4, offset = 0x4, fixed_abs, tag = 'smem constant byte address 0x4 - core index']
  #allocation1 [shape = 'u32[144,128]{1,0:T(1,128)}', space=vmem, size = 0x12000, scoped, tag = 'internal scratch']
  %s0 = inlined_call_operand.vmem [shape: s32[16,1], index: 0, kind: input, shape index: {}]
  %s1 = inlined_call_operand.vmem [shape: f32[72,32], index: 1, kind: input, shape index: {}]
  %s2 = inlined_call_operand.vmem [shape: f32[72,16], index: 2, kind: input, shape index: {}]
  %s3 = inlined_call_operand.vmem [shape: f32[32,16], index: 3, kind: input, shape index: {}]
  %s4 = inlined_call_operand.hbm [shape: f32[16,32], index: 4, kind: output, shape index: {}]
  %s5 = sld [smem:[#allocation0]]
  $region49: #{tpu_custom_call.1} parent=0
    _
  %s7 = ssub.s32 1, %s5
  %s8 = scalar_select 0, %s7, %s5
  $region1: #{tpu_custom_call.1} parent=0
    #allocation2 [shape = 'u8[8192]{0}', space=vmem, size = 0x2000, scoped, tag = 'output window, operand 0']
    #allocation3 [shape = 's32[2]{0}', space=sflag, size = 0x8, scoped, tag = 'scoped memory for tpu_custom_call.1']
    %9 = vsyncpa [#allocation3], 0
    %s10 = scalar_lea.sflag [#allocation3], 1
    %11 = vsyncpa %s10, 0
    loop: start=0, step=1, limit=4
    $region2: #{tpu_custom_call.1} parent=1 // loop_pre_header
      _
    $region3: #{tpu_custom_call.1} parent=1 // loop_header
      %s13 = sphi 0, %s17
      %p14 = scmp.ge.s32.totalorder %s13, 4
      %s23 = sphi 0, %s25
      %s26 = sphi 0, %s23
      %s27 = sphi 0, %s26
      %s43 = sphi 0, %s27
      %s47 = sphi 0, %s47
      %s49 = sphi 0, %s47
      %s50 = sphi 0, %s49
      %s64 = sphi 0, %s50
      %s68 = sphi 0, %s68
      %s70 = sphi 0, %s68
      %s71 = sphi 0, %s70
      %s85 = sphi 0, %s71
      %s89 = sphi 0, %s89
      %s91 = sphi 0, %s89
      %s92 = sphi 0, %s91
      %s106 = sphi 0, %s92
      %s112 = sphi 0, %s114
      %s115 = sphi 0, %s112
      %s116 = sphi 0, %s115
      %s132 = sphi 0, %s116
    $region4: #{tpu_custom_call.1} parent=1 // loop_header_branch
      %16 = sbr.rel (%p14) target = $region8
    $region5: #{tpu_custom_call.1} parent=1 // loop_body
      %s18 = ssub.s32 %s13, 1
      %s19 = ssub.s32 %s13, 2
      %s20 = sadd.s32 %s13, 1
      %s21 = ssub.s32 %s13, %s20
      %p22 = scmp.eq.s32.totalorder %s21, 0
      %s24 = sadd.s32 %s23, 1
      %s25 = scalar_select %p22, %s23, %s24
      %p28 = pneg %p22
      %p29 = scmp.eq.s32.totalorder %s13, 1
      %p30 = por %p28, %p29
      %p31 = scmp.ne.s32.totalorder %s23, %s26
      %p32 = scmp.eq.s32.totalorder %s13, 0
      %p33 = por %p31, %p32
      %p34 = scmp.ne.s32.totalorder %s23, %s26
      %p35 = scmp.eq.s32.totalorder %s18, 1
      %p36 = por %p34, %p35
      %p37 = scmp.ne.s32.totalorder %s26, %s27
      %p38 = scmp.eq.s32.totalorder %s18, 0
      %p39 = por %p37, %p38
      %p40 = scmp.ne.s32.totalorder %s26, %s27
      %p41 = scmp.eq.s32.totalorder %s19, 1
      %p42 = por %p40, %p41
      %p44 = scmp.ne.s32.totalorder %s27, %s43
      %p45 = scmp.eq.s32.totalorder %s19, 0
      %p46 = por %p44, %p45
      %s48 = sadd.s32 %s47, 1
      %p51 = scmp.eq.s32.totalorder %s13, 1
      %p52 = scmp.ne.s32.totalorder %s47, %s49
      %p53 = scmp.eq.s32.totalorder %s13, 0
      %p54 = por %p52, %p53
      %p55 = scmp.ne.s32.totalorder %s47, %s49
      %p56 = scmp.eq.s32.totalorder %s18, 1
      %p57 = por %p55, %p56
      %p58 = scmp.ne.s32.totalorder %s49, %s50
      %p59 = scmp.eq.s32.totalorder %s18, 0
      %p60 = por %p58, %p59
      %p61 = scmp.ne.s32.totalorder %s49, %s50
      %p62 = scmp.eq.s32.totalorder %s19, 1
      %p63 = por %p61, %p62
      %p65 = scmp.ne.s32.totalorder %s50, %s64
      %p66 = scmp.eq.s32.totalorder %s19, 0
      %p67 = por %p65, %p66
      %s69 = sadd.s32 %s68, 1
      %p72 = scmp.eq.s32.totalorder %s13, 1
      %p73 = scmp.ne.s32.totalorder %s68, %s70
      %p74 = scmp.eq.s32.totalorder %s13, 0
      %p75 = por %p73, %p74
      %p76 = scmp.ne.s32.totalorder %s68, %s70
      %p77 = scmp.eq.s32.totalorder %s18, 1
      %p78 = por %p76, %p77
      %p79 = scmp.ne.s32.totalorder %s70, %s71
      %p80 = scmp.eq.s32.totalorder %s18, 0
      %p81 = por %p79, %p80
      %p82 = scmp.ne.s32.totalorder %s70, %s71
      %p83 = scmp.eq.s32.totalorder %s19, 1
      %p84 = por %p82, %p83
      %p86 = scmp.ne.s32.totalorder %s71, %s85
      %p87 = scmp.eq.s32.totalorder %s19, 0
      %p88 = por %p86, %p87
      %s90 = sadd.s32 %s89, 1
      %p93 = scmp.eq.s32.totalorder %s13, 1
      %p94 = scmp.ne.s32.totalorder %s89, %s91
      %p95 = scmp.eq.s32.totalorder %s13, 0
      %p96 = por %p94, %p95
      %p97 = scmp.ne.s32.totalorder %s89, %s91
      %p98 = scmp.eq.s32.totalorder %s18, 1
      %p99 = por %p97, %p98
      %p100 = scmp.ne.s32.totalorder %s91, %s92
      %p101 = scmp.eq.s32.totalorder %s18, 0
      %p102 = por %p100, %p101
      %p103 = scmp.ne.s32.totalorder %s91, %s92
      %p104 = scmp.eq.s32.totalorder %s19, 1
      %p105 = por %p103, %p104
      %p107 = scmp.ne.s32.totalorder %s92, %s106
      %p108 = scmp.eq.s32.totalorder %s19, 0
      %p109 = por %p107, %p108
      %s110 = ssub.s32 %s13, %s20
      %p111 = scmp.eq.s32.totalorder %s110, 0
      %s113 = sadd.s32 %s112, 1
      %s114 = scalar_select %p111, %s112, %s113
      %p117 = pneg %p111
      %p118 = scmp.eq.s32.totalorder %s13, 1
      %p119 = por %p117, %p118
      %p120 = scmp.ne.s32.totalorder %s112, %s115
      %p121 = scmp.eq.s32.totalorder %s13, 0
      %p122 = por %p120, %p121
      %p123 = scmp.ne.s32.totalorder %s112, %s115
      %p124 = scmp.eq.s32.totalorder %s18, 1
      %p125 = por %p123, %p124
      %p126 = scmp.ne.s32.totalorder %s115, %s116
      %p127 = scmp.eq.s32.totalorder %s18, 0
      %p128 = por %p126, %p127
      %p129 = scmp.ne.s32.totalorder %s115, %s116
      %p130 = scmp.eq.s32.totalorder %s19, 1
      %p131 = por %p129, %p130
      %p133 = scmp.ne.s32.totalorder %s116, %s132
      %p134 = scmp.eq.s32.totalorder %s19, 0
      %p135 = por %p133, %p134
      %p136 = scmp.le.s32.totalorder 1, %s13
      %p137 = scmp.lt.s32.totalorder %s13, 3
      %p138 = pnand %p136, %p137
      %p139 = pneg %p138
      // Predicated region
      $region9: #{tpu_custom_call.1} parent=5 // pred_check
        _
      $region10: #{tpu_custom_call.1} parent=5 // pred_check_branch
        %141 = sbr.rel (%p138) target = $region12
      $region11: #{tpu_custom_call.1} parent=5 // pred_region
        %s142 = ssub.s32 %s13, 1
        // Predicated region
        $region13: #{tpu_custom_call.1} parent=11 // pred_check
          %p143 = pneg %p60
        $region14: #{tpu_custom_call.1} parent=11 // pred_check_branch
          %145 = sbr.rel (%p143) target = $region16
        $region15: #{tpu_custom_call.1} parent=11 // pred_region
          _
        $region16: #{tpu_custom_call.1} parent=11 // pred_fallthru
          _
        // Predicated region
        $region17: #{tpu_custom_call.1} parent=11 // pred_check
          %p146 = pneg %p81
        $region18: #{tpu_custom_call.1} parent=11 // pred_check_branch
          %148 = sbr.rel (%p146) target = $region20
        $region19: #{tpu_custom_call.1} parent=11 // pred_region
          _
        $region20: #{tpu_custom_call.1} parent=11 // pred_fallthru
          _
        // Predicated region
        $region21: #{tpu_custom_call.1} parent=11 // pred_check
          %p149 = pneg %p102
        $region22: #{tpu_custom_call.1} parent=11 // pred_check_branch
          %151 = sbr.rel (%p149) target = $region24
        $region23: #{tpu_custom_call.1} parent=11 // pred_region
          _
        $region24: #{tpu_custom_call.1} parent=11 // pred_fallthru
          _
      $region12: #{tpu_custom_call.1} parent=5 // pred_fallthru
        _
      %p152 = scmp.lt.s32.totalorder %s13, 2
      // Predicated region
      $region25: #{tpu_custom_call.1} parent=5 // pred_check
        %p153 = pneg %p152
      $region26: #{tpu_custom_call.1} parent=5 // pred_check_branch
        %155 = sbr.rel (%p153) target = $region28
      $region27: #{tpu_custom_call.1} parent=5 // pred_region
        // Predicated region
        $region29: #{tpu_custom_call.1} parent=27 // pred_check
          %p156 = pneg %p33
        $region30: #{tpu_custom_call.1} parent=27 // pred_check_branch
          %158 = sbr.rel (%p156) target = $region32
        $region31: #{tpu_custom_call.1} parent=27 // pred_region
          %p159 = scmp.lt.s32.totalorder %s13, 1
          %s160 = scalar_select %p159, %s13, 1
          %s161 = smul.addr %s160, 8
          %s162 = scalar_lea.vmem %s0, %s161
        $region32: #{tpu_custom_call.1} parent=27 // pred_fallthru
          _
      $region28: #{tpu_custom_call.1} parent=5 // pred_fallthru
        _
      %p163 = scmp.le.s32.totalorder 1, %s13
      %p164 = scmp.lt.s32.totalorder %s13, 3
      %p165 = pnand %p163, %p164
      %p166 = pneg %p165
      // Predicated region
      $region33: #{tpu_custom_call.1} parent=5 // pred_check
        _
      $region34: #{tpu_custom_call.1} parent=5 // pred_check_branch
        %168 = sbr.rel (%p165) target = $region36
      $region35: #{tpu_custom_call.1} parent=5 // pred_region
        %s169 = ssub.s32 %s13, 1
        %p170 = scmp.lt.s32.totalorder %s18, 1
        %s171 = scalar_select %p170, %s18, 1
        %s172 = smul.addr %s171, 8
        %s173 = scalar_lea.vmem %s0, %s172
        %p174 = pneg %p39
        %p175 = pneg %p36
        %p176 = pneg %p60
        %p177 = pneg %p57
        %p178 = pneg %p81
        %p179 = pneg %p78
        %p180 = pneg %p102
        %p181 = pneg %p99
        %p182 = pneg %p128
        %p183 = pneg %p125
        %s184 = sand.u32 %s115, 1
        %s185 = scalar_lea.sflag [#allocation3], %s184
        %s186 = sand.u32 %s115, 1
        %s187 = smul.addr %s186, 8
        %s188 = scalar_lea.vmem [#allocation2], %s187
        %p189 = scmp.lt.s32.totalorder %s18, 1
        %s190 = scalar_select %p189, %s18, 1
        %s191 = smul.addr %s190, 8
        %s192 = scalar_lea.vmem %s0, %s191
        %v193 = vld [vmem:[%s192] sm:$0xff]
        %v194 = vlaneseq
        %v195 = vand.u32 %v194, 127
        %196 = vset.pattern.permute.xlu0 0
        %197 = vperm.xlu0 %196, %v193
        %v198 = vpop.permute.xlu0 %197
        %vm199 = vcmp.eq.s32.totalorder %v195, %v198
        %v200 = vsel %vm199, 1, 0
        %v201 = vcvt.s32.f32 %v200
        %v202 = vld [vmem:[%s1] sm:$0xff]
        %v203 = vld [vmem:[%s1 + $0x8] sm:$0xff]
        %v204 = vld [vmem:[%s1 + $0x10] sm:$0xff]
        %v205 = vld [vmem:[%s1 + $0x18] sm:$0xff]
        %v206 = vld [vmem:[%s1 + $0x20] sm:$0xff]
        %v207 = vld [vmem:[%s1 + $0x28] sm:$0xff]
        %v208 = vld [vmem:[%s1 + $0x30] sm:$0xff]
        %v209 = vld [vmem:[%s1 + $0x38] sm:$0xff]
        %v210 = vld [vmem:[%s1 + $0x40] sm:$0xff]
        %v211 = vld [vmem:[%s2] sm:$0xff]
        %v212 = vld [vmem:[%s2 + $0x8] sm:$0xff]
        %v213 = vld [vmem:[%s2 + $0x10] sm:$0xff]
        %v214 = vld [vmem:[%s2 + $0x18] sm:$0xff]
        %v215 = vld [vmem:[%s2 + $0x20] sm:$0xff]
        %v216 = vld [vmem:[%s2 + $0x28] sm:$0xff]
        %v217 = vld [vmem:[%s2 + $0x30] sm:$0xff]
        %v218 = vld [vmem:[%s2 + $0x38] sm:$0xff]
        %v219 = vld [vmem:[%s2 + $0x40] sm:$0xff]
        %vm220 = vcmask 588800
        %v222 = vsel %vm220, %v201, 0
        %224 = vmatprep.subr.mxu0 0.0
        %225 = vmatpush1.msra.mxu0 %v211
        %226 = vmatprep.subr.mxu0 0.0
        %227 = vmatpush1.msra.mxu0 %v212
        %228 = vmatprep.subr.mxu0 0.0
        %229 = vmatpush1.msra.mxu0 %v213
        %230 = vmatprep.subr.mxu0 0.0
        %231 = vmatpush1.msra.mxu0 %v214
        %232 = vmatprep.subr.mxu0 0.0
        %233 = vmatpush1.msra.mxu0 %v215
        %234 = vmatprep.subr.mxu0 0.0
        %235 = vmatpush1.msra.mxu0 %v216
        %236 = vmatprep.subr.mxu0 0.0
        %237 = vmatpush1.msra.mxu0 %v217
        %238 = vmatprep.subr.mxu0 0.0
        %239 = vmatpush1.msra.mxu0 %v218
        %240 = vmatprep.subr.mxu0 0.0
        %241 = vmatpush1.msra.mxu0 %v219
        %242 = vmatprep.subr.mxu0 0.0
        %243 = vmatpush1.msra.mxu0 0.0
        %244 = vmatprep.subr.mxu0 0.0
        %245 = vmatpush1.msra.mxu0 0.0
        %246 = vmatprep.subr.mxu0 0.0
        %247 = vmatpush1.msra.mxu0 0.0
        %248 = vmatprep.subr.mxu0 0.0
        %249 = vmatpush1.msra.mxu0 0.0
        %250 = vmatprep.subr.mxu0 0.0
        %251 = vmatpush1.msra.mxu0 0.0
        %252 = vmatprep.subr.mxu0 0.0
        %253 = vmatpush1.msra.mxu0 0.0
        %254 = vmatprep.subr.mxu0 0.0
        %255 = vmatpush1.msra.mxu0 0.0
        %256 = vmatprep.subr.mxu0 0.0
        %257 = vmatpush1.msra.mxu0 0.0
        %258 = vmatprep.subr.mxu0 0.0
        %259 = vmatpush1.msra.mxu0 0.0
        %260 = vmatprep.subr.mxu0 0.0
        %261 = vmatpush1.msra.mxu0 0.0
        %262 = vmatprep.subr.mxu0 0.0
        %263 = vmatpush1.msra.mxu0 0.0
        %264 = vmatprep.subr.mxu0 0.0
        %265 = vmatpush1.msra.mxu0 0.0
        %266 = vmatprep.subr.mxu0 0.0
        %267 = vmatpush1.msra.mxu0 0.0
        %268 = vmatprep.subr.mxu0 0.0
        %269 = vmatpush1.msra.mxu0 0.0
        %270 = vmatprep.subr.mxu0 0.0
        %271 = vmatpush1.msra.mxu0 0.0
        %272 = vmatprep.subr.mxu0 0.0
        %273 = vmatpush1.msra.mxu0 0.0
        %274 = vmatprep.subr.mxu0 0.0
        %275 = vmatpush1.msra.mxu0 0.0
        %276 = vmatprep.subr.mxu0 0.0
        %277 = vmatpush1.msra.mxu0 0.0
        %278 = vmatprep.subr.mxu0 0.0
        %279 = vmatpush1.msra.mxu0 0.0
        %280 = vmatprep.subr.mxu0 0.0
        %281 = vmatpush1.msra.mxu0 0.0
        %282 = vmatprep.subr.mxu0 0.0
        %283 = vmatpush1.msra.mxu0 0.0
        %284 = vmatprep.subr.mxu0 0.0
        %285 = vmatpush1.msra.mxu0 0.0
        %286 = vmatprep.subr.mxu0 0.0
        %287 = vmatpush1.msra.mxu0 0.0
        %288 = vmatprep.mubr.f32.mxu0 0.0
        %289 = vmatmul.mubr.f32.gmra.mrb[0].mxu0 %v222
        %v290 = vpop.f32.mrb[0].mxu0
        %v291 = vadd.f32 0.0, %v290
        %v292 = vpop.f32.mrb[0].mxu0
        %293 = vdwg.mxu0
        %v294 = vld [vmem:[%s3] sm:$0xff]
        %v295 = vld [vmem:[%s3 + $0x8] sm:$0xff]
        %v296 = vld [vmem:[%s3 + $0x10] sm:$0xff]
        %v297 = vld [vmem:[%s3 + $0x18] sm:$0xff]
        %vm298 = vcmask 130048
        %v300 = vsel %vm298, %v291, 0
        %v303 = vsel %vm298, %v294, 0
        %v306 = vsel %vm298, %v295, 0
        %v309 = vsel %vm298, %v296, 0
        %v312 = vsel %vm298, %v297, 0
        %314 = vmatprep.subr.mxu0 0.0
        %315 = vmatpush1.xpose.msra.mxu0 %v303
        %316 = vmatprep.subr.mxu0 0.0
        %317 = vmatpush1.xpose.msra.mxu0 %v306
        %318 = vmatprep.subr.mxu0 0.0
        %319 = vmatpush1.xpose.msra.mxu0 %v309
        %320 = vmatprep.subr.mxu0 0.0
        %321 = vmatpush1.xpose.msra.mxu0 %v312
        %322 = vmatprep.subr.mxu0 0.0
        %323 = vmatpush1.xpose.msra.mxu0 0.0
        %324 = vmatprep.subr.mxu0 0.0
        %325 = vmatpush1.xpose.msra.mxu0 0.0
        %326 = vmatprep.subr.mxu0 0.0
        %327 = vmatpush1.xpose.msra.mxu0 0.0
        %328 = vmatprep.subr.mxu0 0.0
        %329 = vmatpush1.xpose.msra.mxu0 0.0
        %330 = vmatprep.subr.mxu0 0.0
        %331 = vmatpush1.xpose.msra.mxu0 0.0
        %332 = vmatprep.subr.mxu0 0.0
        %333 = vmatpush1.xpose.msra.mxu0 0.0
        %334 = vmatprep.subr.mxu0 0.0
        %335 = vmatpush1.xpose.msra.mxu0 0.0
        %336 = vmatprep.subr.mxu0 0.0
        %337 = vmatpush1.xpose.msra.mxu0 0.0
        %338 = vmatprep.subr.mxu0 0.0
        %339 = vmatpush1.xpose.msra.mxu0 0.0
        %340 = vmatprep.subr.mxu0 0.0
        %341 = vmatpush1.xpose.msra.mxu0 0.0
        %342 = vmatprep.subr.mxu0 0.0
        %343 = vmatpush1.xpose.msra.mxu0 0.0
        %344 = vmatprep.subr.mxu0 0.0
        %345 = vmatpush1.xpose.msra.mxu0 0.0
        %346 = vmatprep.subr.mxu0 0.0
        %347 = vmatpush1.xpose.msra.mxu0 0.0
        %348 = vmatprep.subr.mxu0 0.0
        %349 = vmatpush1.xpose.msra.mxu0 0.0
        %350 = vmatprep.subr.mxu0 0.0
        %351 = vmatpush1.xpose.msra.mxu0 0.0
        %352 = vmatprep.subr.mxu0 0.0
        %353 = vmatpush1.xpose.msra.mxu0 0.0
        %354 = vmatprep.subr.mxu0 0.0
        %355 = vmatpush1.xpose.msra.mxu0 0.0
        %356 = vmatprep.subr.mxu0 0.0
        %357 = vmatpush1.xpose.msra.mxu0 0.0
        %358 = vmatprep.subr.mxu0 0.0
        %359 = vmatpush1.xpose.msra.mxu0 0.0
        %360 = vmatprep.subr.mxu0 0.0
        %361 = vmatpush1.xpose.msra.mxu0 0.0
        %362 = vmatprep.subr.mxu0 0.0
        %363 = vmatpush1.xpose.msra.mxu0 0.0
        %364 = vmatprep.subr.mxu0 0.0
        %365 = vmatpush1.xpose.msra.mxu0 0.0
        %366 = vmatprep.subr.mxu0 0.0
        %367 = vmatpush1.xpose.msra.mxu0 0.0
        %368 = vmatprep.subr.mxu0 0.0
        %369 = vmatpush1.xpose.msra.mxu0 0.0
        %370 = vmatprep.subr.mxu0 0.0
        %371 = vmatpush1.xpose.msra.mxu0 0.0
        %372 = vmatprep.subr.mxu0 0.0
        %373 = vmatpush1.xpose.msra.mxu0 0.0
        %374 = vmatprep.subr.mxu0 0.0
        %375 = vmatpush1.xpose.msra.mxu0 0.0
        %376 = vmatprep.subr.mxu0 0.0
        %377 = vmatpush1.xpose.msra.mxu0 0.0
        %378 = vmatprep.mubr.f32.mxu0 0.0
        %379 = vmatmul.mubr.f32.gmra.mrb[0].mxu0 %v300
        %v380 = vpop.f32.mrb[0].mxu0
        %v381 = vadd.f32 0.0, %v380
        %v382 = vpop.f32.mrb[0].mxu0
        %383 = vdwg.mxu0
        %384 = vmatprep.subr.mxu0 0.0
        %385 = vmatpush1.msra.mxu0 %v202
        %386 = vmatprep.subr.mxu0 0.0
        %387 = vmatpush1.msra.mxu0 %v203
        %388 = vmatprep.subr.mxu0 0.0
        %389 = vmatpush1.msra.mxu0 %v204
        %390 = vmatprep.subr.mxu0 0.0
        %391 = vmatpush1.msra.mxu0 %v205
        %392 = vmatprep.subr.mxu0 0.0
        %393 = vmatpush1.msra.mxu0 %v206
        %394 = vmatprep.subr.mxu0 0.0
        %395 = vmatpush1.msra.mxu0 %v207
        %396 = vmatprep.subr.mxu0 0.0
        %397 = vmatpush1.msra.mxu0 %v208
        %398 = vmatprep.subr.mxu0 0.0
        %399 = vmatpush1.msra.mxu0 %v209
        %400 = vmatprep.subr.mxu0 0.0
        %401 = vmatpush1.msra.mxu0 %v210
        %402 = vmatprep.subr.mxu0 0.0
        %403 = vmatpush1.msra.mxu0 0.0
        %404 = vmatprep.subr.mxu0 0.0
        %405 = vmatpush1.msra.mxu0 0.0
        %406 = vmatprep.subr.mxu0 0.0
        %407 = vmatpush1.msra.mxu0 0.0
        %408 = vmatprep.subr.mxu0 0.0
        %409 = vmatpush1.msra.mxu0 0.0
        %410 = vmatprep.subr.mxu0 0.0
        %411 = vmatpush1.msra.mxu0 0.0
        %412 = vmatprep.subr.mxu0 0.0
        %413 = vmatpush1.msra.mxu0 0.0
        %414 = vmatprep.subr.mxu0 0.0
        %415 = vmatpush1.msra.mxu0 0.0
        %416 = vmatprep.subr.mxu0 0.0
        %417 = vmatpush1.msra.mxu0 0.0
        %418 = vmatprep.subr.mxu0 0.0
        %419 = vmatpush1.msra.mxu0 0.0
        %420 = vmatprep.subr.mxu0 0.0
        %421 = vmatpush1.msra.mxu0 0.0
        %422 = vmatprep.subr.mxu0 0.0
        %423 = vmatpush1.msra.mxu0 0.0
        %424 = vmatprep.subr.mxu0 0.0
        %425 = vmatpush1.msra.mxu0 0.0
        %426 = vmatprep.subr.mxu0 0.0
        %427 = vmatpush1.msra.mxu0 0.0
        %428 = vmatprep.subr.mxu0 0.0
        %429 = vmatpush1.msra.mxu0 0.0
        %430 = vmatprep.subr.mxu0 0.0
        %431 = vmatpush1.msra.mxu0 0.0
        %432 = vmatprep.subr.mxu0 0.0
        %433 = vmatpush1.msra.mxu0 0.0
        %434 = vmatprep.subr.mxu0 0.0
        %435 = vmatpush1.msra.mxu0 0.0
        %436 = vmatprep.subr.mxu0 0.0
        %437 = vmatpush1.msra.mxu0 0.0
        %438 = vmatprep.subr.mxu0 0.0
        %439 = vmatpush1.msra.mxu0 0.0
        %440 = vmatprep.subr.mxu0 0.0
        %441 = vmatpush1.msra.mxu0 0.0
        %442 = vmatprep.subr.mxu0 0.0
        %443 = vmatpush1.msra.mxu0 0.0
        %444 = vmatprep.subr.mxu0 0.0
        %445 = vmatpush1.msra.mxu0 0.0
        %446 = vmatprep.subr.mxu0 0.0
        %447 = vmatpush1.msra.mxu0 0.0
        %448 = vmatprep.mubr.f32.mxu0 0.0
        %449 = vmatmul.mubr.f32.gmra.mrb[0].mxu0 %v222
        %v450 = vpop.f32.mrb[0].mxu0
        %v451 = vadd.f32 %v381, %v450
        %v452 = vpop.f32.mrb[0].mxu0
        %453 = vdwg.mxu0
        %vm454 = vcmask 261120
        %455 = vst.msk [vmem:[%s188] sm:$0xff] %vm454, %v451
        %s456 = sand.u32 %s115, 1
        %s457 = scalar_lea.sflag [#allocation3], %s456
        %s458 = sand.u32 %s115, 1
        %s459 = smul.addr %s458, 8
        %s460 = scalar_lea.vmem [#allocation2], %s459
        // Predicated region
        $region37: #{tpu_custom_call.1} parent=35 // pred_check
          %p461 = pneg %p125
        $region38: #{tpu_custom_call.1} parent=35 // pred_check_branch
          %463 = sbr.rel (%p461) target = $region40
        $region39: #{tpu_custom_call.1} parent=35 // pred_region
          %s465 = ssub.s32 128, 128
          %466 = vsyncadd %s457, %s465
          %s467 = smul.addr %s18, 128
          %s468 = scalar_lea.hbm %s4, %s467
          %s470 = sshll.u32 %s460, 4
          %s471 = int_to_ptr.vmem [resolvable:$true] %s470
          %473 = dma.vmem_to_hbm [thread:$0]  %s471, 128, %s468, %s457
        $region40: #{tpu_custom_call.1} parent=35 // pred_fallthru
          _
      $region36: #{tpu_custom_call.1} parent=5 // pred_fallthru
        _
      %p474 = scmp.le.s32.totalorder 2, %s13
      // Predicated region
      $region41: #{tpu_custom_call.1} parent=5 // pred_check
        %p475 = pneg %p474
      $region42: #{tpu_custom_call.1} parent=5 // pred_check_branch
        %477 = sbr.rel (%p475) target = $region44
      $region43: #{tpu_custom_call.1} parent=5 // pred_region
        %s478 = ssub.s32 %s13, 2
        // Predicated region
        $region45: #{tpu_custom_call.1} parent=43 // pred_check
          %p479 = pneg %p131
        $region46: #{tpu_custom_call.1} parent=43 // pred_check_branch
          %481 = sbr.rel (%p479) target = $region48
        $region47: #{tpu_custom_call.1} parent=43 // pred_region
          %s482 = sand.u32 %s116, 1
          %s483 = scalar_lea.sflag [#allocation3], %s482
          %s484 = sand.u32 %s116, 1
          %s485 = smul.addr %s484, 8
          %s486 = scalar_lea.vmem [#allocation2], %s485
          %487 = dma.done %s483, 128
        $region48: #{tpu_custom_call.1} parent=43 // pred_fallthru
          _
      $region44: #{tpu_custom_call.1} parent=5 // pred_fallthru
        _
    $region6: #{tpu_custom_call.1} parent=1 // loop_footer
      %s17 = sadd.s32 1, %s13
    $region7: #{tpu_custom_call.1} parent=1 // loop_footer_branch
      %12 = sbr.rel target = $region3
    $region8: #{tpu_custom_call.1} parent=1 // loop_exit
      _
    %488 = vsyncpa [#allocation3], 1
    %s489 = scalar_lea.sflag [#allocation3], 1
    %490 = vsyncpa %s489, 1

</llo_original>
